<compile_context>
chip_gen: v5e
topology: v5e:2x2
jax: 0.10.0
libtpu: 0.0.40
codegen_flags: <defaults>
</compile_context>

<pallas_src>
import functools

import jax
import jax.numpy as jnp
from jax.experimental import pallas as pl
from jax.experimental.pallas import tpu as pltpu


def _linear_single_k_kernel(x_ref, w_ref, b_ref, o_ref):
    """Whole K contraction in one shot; grid = (M/tm, N/tn)."""
    acc = jnp.dot(x_ref[...], w_ref[...], preferred_element_type=jnp.float32)
    o_ref[...] = (acc + b_ref[...]).astype(o_ref.dtype)


def _linear_kloop_kernel(x_ref, w_ref, b_ref, o_ref, acc_ref):
    """K-innermost accumulation; grid = (M/tm, N/tn, K/tk)."""
    k = pl.program_id(2)

    @pl.when(k == 0)
    def _():
        acc_ref[...] = jnp.zeros_like(acc_ref)

    acc_ref[...] += jnp.dot(
        x_ref[...], w_ref[...], preferred_element_type=jnp.float32
    )

    @pl.when(k == pl.num_programs(2) - 1)
    def _():
        o_ref[...] = (acc_ref[...] + b_ref[...]).astype(o_ref.dtype)


@functools.partial(jax.jit, static_argnames=("tm", "tn", "tk"))
def embedding_forward(x, w_t, b, *, tm=None, tn=None, tk=None):
    """x: (M, K) f32, w_t: (K, N) f32 (transposed weight), b: (N,) f32."""
    M, K = x.shape
    K2, N = w_t.shape
    assert K == K2
    b2d = b.reshape(1, N).astype(jnp.float32)

    # --- Adaptive tile sizing (largest tiles that comfortably fit scoped
    # VMEM on v5e/v6e/v7x; worst case ~8 MiB of double-buffered f32 tiles). ---
    if tm is None:
        tm = M if M <= 256 else 256          # full M, or a multiple of 8
    if tn is None:
        tn = N if N <= 1024 else 1024        # full N, or a multiple of 128
    if tk is None:
        tk = K if K <= 1024 else 512         # full K (no K loop), or mult. of 128

    # --- K-remainder correctness: zero-pad K so the K loop never sums a
    # partial, unmasked tile. (Zero padding contributes nothing.) ---
    if tk < K and K % tk != 0:
        pad = tk - (K % tk)
        x = jnp.pad(x, ((0, 0), (0, pad)))
        w_t = jnp.pad(w_t, ((0, pad), (0, 0)))
        K = K + pad

    kt = pl.cdiv(K, tk)

    if kt == 1:
        # Single K block: no accumulator, no K grid axis, no pl.when.
        return pl.pallas_call(
            _linear_single_k_kernel,
            out_shape=jax.ShapeDtypeStruct((M, N), x.dtype),
            grid_spec=pltpu.PrefetchScalarGridSpec(
                num_scalar_prefetch=0,
                grid=(pl.cdiv(M, tm), pl.cdiv(N, tn)),
                in_specs=[
                    pl.BlockSpec((tm, tk), lambda i, j: (i, 0)),   # x tile
                    pl.BlockSpec((tk, tn), lambda i, j: (0, j)),   # w_t tile
                    pl.BlockSpec((1, tn), lambda i, j: (0, j)),    # bias tile
                ],
                out_specs=pl.BlockSpec((tm, tn), lambda i, j: (i, j)),
            ),
            compiler_params=pltpu.CompilerParams(
                dimension_semantics=("parallel", "parallel")
            ),
        )(x, w_t, b2d)

    # K loop path (large in_features): K-innermost accumulation in f32 scratch.
    return pl.pallas_call(
        _linear_kloop_kernel,
        out_shape=jax.ShapeDtypeStruct((M, N), x.dtype),
        grid_spec=pltpu.PrefetchScalarGridSpec(
            num_scalar_prefetch=0,
            grid=(pl.cdiv(M, tm), pl.cdiv(N, tn), kt),
            in_specs=[
                pl.BlockSpec((tm, tk), lambda i, j, k: (i, k)),    # x tile
                pl.BlockSpec((tk, tn), lambda i, j, k: (k, j)),    # w_t tile
                pl.BlockSpec((1, tn), lambda i, j, k: (0, j)),     # bias tile
            ],
            out_specs=pl.BlockSpec((tm, tn), lambda i, j, k: (i, j)),
            scratch_shapes=[pltpu.VMEM((tm, tn), jnp.float32)],
        ),
        compiler_params=pltpu.CompilerParams(
            dimension_semantics=("parallel", "parallel", "arbitrary")
        ),
    )(x, w_t, b2d)


if __name__ == "__main__":
    key = jax.random.PRNGKey(0)

    # --- Case 1: shapes implied by the module (Linear(in_features -> n_embedding)),
    # small in_features -> single-block, no-K-loop fast path. ---
    batch, in_features, n_embedding = 8, 32, 128
    kx, kw, kb, key = jax.random.split(key, 4)

    bound = 1.0 / jnp.sqrt(jnp.float32(in_features))
    # PyTorch stores weight as (n_embedding, in_features); we keep its transpose.
    w = jax.random.uniform(kw, (n_embedding, in_features), jnp.float32, -bound, bound)
    b = jax.random.uniform(kb, (n_embedding,), jnp.float32, -bound, bound)
    w_t = w.T  # (in_features, n_embedding)
    x = jax.random.normal(kx, (batch, in_features), jnp.float32)

    out = jax.block_until_ready(embedding_forward(x, w_t, b))
    ref = x @ w_t + b[None, :]
    assert out.shape == (batch, n_embedding)
    assert jnp.allclose(out, ref, atol=1e-5, rtol=1e-5)

    # --- Case 2: larger in_features to exercise the K-loop path with the
    # zero-padded K remainder (K=1280 -> tk=512, padded to 1536). ---
    batch2, in2, n2 = 16, 1280, 256
    kx2, kw2, kb2, key = jax.random.split(key, 4)
    bound2 = 1.0 / jnp.sqrt(jnp.float32(in2))
    w2 = jax.random.uniform(kw2, (n2, in2), jnp.float32, -bound2, bound2)
    b2 = jax.random.uniform(kb2, (n2,), jnp.float32, -bound2, bound2)
    x2 = jax.random.normal(kx2, (batch2, in2), jnp.float32)

    out2 = jax.block_until_ready(embedding_forward(x2, w2.T, b2))
    ref2 = x2 @ w2.T + b2[None, :]
    assert out2.shape == (batch2, n2)
    assert jnp.allclose(out2, ref2, atol=1e-4, rtol=1e-4)

    print("KERNEL_OK")
</pallas_src>

<mosaic_0001>
module attributes {stable_mosaic.version = 11 : i64} {
  func.func @_linear_single_k_kernel(%arg0: i32, %arg1: i32, %arg2: memref<8x32xf32, #tpu.memory_space<vmem>>, %arg3: memref<32x128xf32, #tpu.memory_space<vmem>>, %arg4: memref<1x128xf32, #tpu.memory_space<vmem>>, %arg5: memref<8x128xf32, #tpu.memory_space<vmem>>) attributes {dimension_semantics = [#tpu.dimension_semantics<parallel>, #tpu.dimension_semantics<parallel>], iteration_bounds = array<i64: 1, 1>, scalar_prefetch = 0 : i64, scratch_operands = 0 : i64, tpu.core_type = #tpu.core_type<tc>, window_params = [{transform_indices = @transform_0, window_bounds = array<i64: 8, 32>}, {transform_indices = @transform_1, window_bounds = array<i64: 32, 128>}, {transform_indices = @transform_2, window_bounds = array<i64: 1, 128>}, {transform_indices = @transform_3, window_bounds = array<i64: 8, 128>}]} {
    %c0 = arith.constant 0 : index
    %c0_0 = arith.constant 0 : index
    %0 = vector.load %arg2[%c0, %c0_0] : memref<8x32xf32, #tpu.memory_space<vmem>>, vector<8x32xf32>
    %c0_1 = arith.constant 0 : index
    %c0_2 = arith.constant 0 : index
    %1 = vector.load %arg3[%c0_1, %c0_2] : memref<32x128xf32, #tpu.memory_space<vmem>>, vector<32x128xf32>
    %cst = arith.constant dense<0.000000e+00> : vector<8x128xf32>
    %2 = tpu.matmul %0, %1, %cst {dimension_numbers = #tpu.dot_dimension_numbers<[1], [0], [0], [1], [0, 0, 1, 1], [], []>} : vector<8x32xf32>, vector<32x128xf32>, vector<8x128xf32> -> vector<8x128xf32>
    %c0_3 = arith.constant 0 : index
    %c0_4 = arith.constant 0 : index
    %3 = vector.load %arg4[%c0_3, %c0_4] : memref<1x128xf32, #tpu.memory_space<vmem>>, vector<1x128xf32>
    %4 = vector.broadcast %3 : vector<1x128xf32> to vector<8x128xf32>
    %5 = arith.addf %2, %4 : vector<8x128xf32>
    %c0_5 = arith.constant 0 : index
    %c0_6 = arith.constant 0 : index
    %6 = vector.load %arg5[%c0_5, %c0_6] : memref<8x128xf32, #tpu.memory_space<vmem>>, vector<8x128xf32>
    tpu.vector_store %arg5[%c0_5, %c0_6], %5 {strides = array<i32>} : memref<8x128xf32, #tpu.memory_space<vmem>>, vector<8x128xf32>,
    return
  }
  func.func @transform_0(%arg0: i32, %arg1: i32) -> (i32, i32) {
    %c0_i32 = arith.constant 0 : i32
    %c0_i32_0 = arith.constant 0 : i32
    return %arg0, %c0_i32 : i32, i32
  }
  func.func @transform_1(%arg0: i32, %arg1: i32) -> (i32, i32) {
    %c0_i32 = arith.constant 0 : i32
    %c0_i32_0 = arith.constant 0 : i32
    return %c0_i32, %arg1 : i32, i32
  }
  func.func @transform_2(%arg0: i32, %arg1: i32) -> (i32, i32) {
    %c0_i32 = arith.constant 0 : i32
    %c0_i32_0 = arith.constant 0 : i32
    return %c0_i32, %arg1 : i32, i32
  }
  func.func @transform_3(%arg0: i32, %arg1: i32) -> (i32, i32) {
    %c0_i32 = arith.constant 0 : i32
    return %arg0, %arg1 : i32, i32
  }
}

</mosaic_0001>

<llo_original>
// kernel: embedding_forward.1
$region0: #{embedding_forward.1}
  #allocation0 [shape = 'u32[]', space=smem, size = 0x4, offset = 0x4, fixed_abs, tag = 'smem constant byte address 0x4 - core index']
  #allocation1 [shape = 'u32[72,128]{1,0:T(1,128)}', space=vmem, size = 0x9000, scoped, tag = 'internal scratch']
  %s0 = inlined_call_operand.hbm [shape: f32[8,32], index: 0, kind: input, shape index: {}]
  %s1 = inlined_call_operand.hbm [shape: f32[32,128], index: 1, kind: input, shape index: {}]
  %s2 = inlined_call_operand.vmem [shape: f32[1,128], index: 2, kind: input, shape index: {}]
  %s3 = inlined_call_operand.hbm [shape: f32[8,128], index: 3, kind: output, shape index: {}]
  %s4 = sld [smem:[#allocation0]]
  $region30: #{embedding_forward.1} parent=0
    _
  %s6 = ssub.s32 1, %s4
  %s7 = scalar_select 0, %s6, %s4
  $region1: #{embedding_forward.1} parent=0
    #allocation2 [shape = 'u8[4096]{0}', space=vmem, size = 0x1000, scoped, tag = 'input window, operand 0, single buffered']
    #allocation3 [shape = 's32[1]{0}', space=sflag, size = 0x4, scoped, tag = 'scoped memory for embedding_forward.1']
    #allocation4 [shape = 's32[1]{0}', space=sflag, size = 0x4, scoped, tag = 'scoped memory for embedding_forward.1']
    #allocation5 [shape = 'u8[16384]{0}', space=vmem, size = 0x4000, scoped, tag = 'input window, operand 1, single buffered']
    #allocation6 [shape = 's32[1]{0}', space=sflag, size = 0x4, scoped, tag = 'scoped memory for embedding_forward.1']
    #allocation7 [shape = 'u8[4096]{0}', space=vmem, size = 0x1000, scoped, tag = 'output window, operand 0, single buffered']
    %8 = vsyncpa [#allocation3], 0
    %9 = vsyncpa [#allocation6], 0
    %10 = vsyncpa [#allocation4], 0
    // Predicated region
    $region2: #{embedding_forward.1} parent=1 // pred_check
      _
    $region3: #{embedding_forward.1} parent=1 // pred_check_branch
      %12 = sbr.rel (0) target = $region5
    $region4: #{embedding_forward.1} parent=1 // pred_region
      %14 = vsyncadd [#allocation3], 0
      %s16 = sshll.u32 %s0, 4
      %s17 = int_to_ptr.hbm [resolvable:$true] %s16
      %s18 = sshll.u32 [#allocation2], 4
      %s19 = int_to_ptr.vmem [resolvable:$true] %s18
      %21 = dma.hbm_to_vmem [thread:$0]  %s17, 128, %s19, [#allocation3]
    $region5: #{embedding_forward.1} parent=1 // pred_fallthru
      _
    // Predicated region
    $region6: #{embedding_forward.1} parent=1 // pred_check
      _
    $region7: #{embedding_forward.1} parent=1 // pred_check_branch
      %23 = sbr.rel (0) target = $region9
    $region8: #{embedding_forward.1} parent=1 // pred_region
      %25 = vsyncadd [#allocation6], 0
      %s26 = sshll.u32 %s1, 4
      %s27 = int_to_ptr.hbm [resolvable:$true] %s26
      %s28 = sshll.u32 [#allocation5], 4
      %s29 = int_to_ptr.vmem [resolvable:$true] %s28
      %34 = dma.hbm_to_vmem [thread:$0]  %s27, 512, %s29, [#allocation6], 128, 128, 8
    $region9: #{embedding_forward.1} parent=1 // pred_fallthru
      _
    // Predicated region
    $region10: #{embedding_forward.1} parent=1 // pred_check
      _
    $region11: #{embedding_forward.1} parent=1 // pred_check_branch
      %36 = sbr.rel (0) target = $region13
    $region12: #{embedding_forward.1} parent=1 // pred_region
      _
    $region13: #{embedding_forward.1} parent=1 // pred_fallthru
      _
    // Predicated region
    $region14: #{embedding_forward.1} parent=1 // pred_check
      _
    $region15: #{embedding_forward.1} parent=1 // pred_check_branch
      %38 = sbr.rel (0) target = $region17
    $region16: #{embedding_forward.1} parent=1 // pred_region
      %40 = dma.done [#allocation3], 128
    $region17: #{embedding_forward.1} parent=1 // pred_fallthru
      _
    // Predicated region
    $region18: #{embedding_forward.1} parent=1 // pred_check
      _
    $region19: #{embedding_forward.1} parent=1 // pred_check_branch
      %42 = sbr.rel (0) target = $region21
    $region20: #{embedding_forward.1} parent=1 // pred_region
      %44 = dma.done [#allocation6], 512
    $region21: #{embedding_forward.1} parent=1 // pred_fallthru
      _
    %v45 = vld [vmem:[#allocation2] sm:$0xff]
    %v46 = vld [vmem:[#allocation5] sm:$0xff]
    %v47 = vld [vmem:[#allocation5 + $0x8] sm:$0xff]
    %v48 = vld [vmem:[#allocation5 + $0x10] sm:$0xff]
    %v49 = vld [vmem:[#allocation5 + $0x18] sm:$0xff]
    %v50 = vld [vmem:[%s2] sm:$0x1]
    %v52 = vperm.slane %v50, 0
    %vm54 = vcmask 261120
    %v56 = vsel %vm54, %v45, 0
    %58 = vmatpush.msra.mxu0 0.0
    %59 = vmatpush.msra.mxu0 0.0
    %60 = vmatpush.msra.mxu0 0.0
    %61 = vmatpush.msra.mxu0 0.0
    %62 = vmatpush.msra.mxu0 0.0
    %63 = vmatpush.msra.mxu0 0.0
    %64 = vmatpush.msra.mxu0 0.0
    %65 = vmatpush.msra.mxu0 0.0
    %66 = vmatpush.msra.mxu0 0.0
    %67 = vmatpush.msra.mxu0 0.0
    %68 = vmatpush.msra.mxu0 0.0
    %69 = vmatpush.msra.mxu0 0.0
    %70 = vmatpush.msra.mxu0 %v49
    %71 = vmatpush.msra.mxu0 %v48
    %72 = vmatpush.msra.mxu0 %v47
    %73 = vmatpush.msra.mxu0 %v46
    %74 = vmatmul.f32.gmra.mxu0 %v56
    %v75 = vpop.f32.mrf.mxu0
    %v76 = vadd.f32 %v52, %v75
    %77 = vdwg.mxu0
    %78 = vst [vmem:[#allocation7] sm:$0xff] %v76
    // Predicated region
    $region22: #{embedding_forward.1} parent=1 // pred_check
      _
    $region23: #{embedding_forward.1} parent=1 // pred_check_branch
      %80 = sbr.rel (0) target = $region25
    $region24: #{embedding_forward.1} parent=1 // pred_region
      %82 = vsyncadd [#allocation4], 0
      %s84 = sshll.u32 [#allocation7], 4
      %s85 = int_to_ptr.vmem [resolvable:$true] %s84
      %s86 = sshll.u32 %s3, 4
      %s87 = int_to_ptr.hbm [resolvable:$true] %s86
      %89 = dma.vmem_to_hbm [thread:$0]  %s85, 128, %s87, [#allocation4]
    $region25: #{embedding_forward.1} parent=1 // pred_fallthru
      _
    // Predicated region
    $region26: #{embedding_forward.1} parent=1 // pred_check
      _
    $region27: #{embedding_forward.1} parent=1 // pred_check_branch
      %91 = sbr.rel (0) target = $region29
    $region28: #{embedding_forward.1} parent=1 // pred_region
      %93 = dma.done [#allocation4], 128
    $region29: #{embedding_forward.1} parent=1 // pred_fallthru
      _
    %94 = vsyncpa [#allocation3], 1
    %95 = vsyncpa [#allocation6], 1
    %96 = vsyncpa [#allocation4], 1

</llo_original>
